<compile_context>
chip_gen: v6e
topology: v6e:2x2x1
jax: 0.10.0
libtpu: 0.0.40
codegen_flags: <defaults>
</compile_context>

<pallas_src>
import jax
import jax.numpy as jnp
from jax.experimental import pallas as pl
from jax.experimental.pallas import tpu as pltpu

_LANES = 128


def _relu_kernel(x_ref, o_ref):
    # Elementwise max(x, 0) on the VPU; non-inplace semantics are natural in JAX.
    o_ref[...] = jnp.maximum(x_ref[...], jnp.zeros((), dtype=x_ref.dtype))


def _round_up(v: int, m: int) -> int:
    return ((v + m - 1) // m) * m


def _relu_2d(x2d: jax.Array, tile_rows: int) -> jax.Array:
    """ReLU over a (rows, 128) slab via a pipelined 1-D grid."""
    rows, lanes = x2d.shape
    if rows >= 64:
        # Multiple-of-32 tile (legal for f32/bf16/int8 packing); keep the grid
        # at >= 2 blocks so both v7x TensorCores get work, capped at tile_rows.
        tile_eff = min(tile_rows, _round_up(pl.cdiv(rows, 2), 32))
    else:
        # Single block equal to the full array dims (always a legal block).
        tile_eff = rows
    grid = (pl.cdiv(rows, tile_eff),)

    return pl.pallas_call(
        _relu_kernel,
        out_shape=jax.ShapeDtypeStruct((rows, lanes), x2d.dtype),
        grid_spec=pltpu.PrefetchScalarGridSpec(
            num_scalar_prefetch=0,
            grid=grid,
            in_specs=[pl.BlockSpec((tile_eff, lanes), lambda i: (i, 0))],
            out_specs=pl.BlockSpec((tile_eff, lanes), lambda i: (i, 0)),
        ),
        compiler_params=pltpu.CompilerParams(
            dimension_semantics=("parallel",)
        ),
    )(x2d)


def non_inplace_relu(x: jax.Array, *, tile_rows: int = 4096) -> jax.Array:
    """ReLU(x), any shape/dtype, computed in a Pallas TPU kernel.

    tile_rows=4096 gives 2 MiB blocks at f32 (~85%+ of HBM roofline on v6e
    class parts) while staying inside default scoped VMEM on v5e/v6e/v7x.
    """
    if tile_rows <= 0 or tile_rows % 32 != 0:
        raise ValueError(
            "tile_rows must be a positive multiple of 32 (sublane packing for "
            "f32/bf16/int8)."
        )

    n = x.size
    if n == 0:
        return x

    x_flat = x.reshape(-1)
    n_main = (n // _LANES) * _LANES  # 128-lane-aligned main slab
    zero = jnp.zeros((), dtype=x.dtype)

    if n_main == n:
        # Fast path: no padding, no tail slice — kernel streams everything.
        out2d = _relu_2d(x_flat.reshape(n // _LANES, _LANES), tile_rows)
        return out2d.reshape(x.shape)

    if n_main == 0:
        # Entire input is smaller than one 128-lane row: trivial wrapper op.
        return jnp.maximum(x, zero)

    # Ragged case: big aligned slab through the kernel, tiny (<128 elem) tail
    # handled directly in the wrapper (no full-array pad + slice passes).
    out_main = _relu_2d(
        x_flat[:n_main].reshape(n_main // _LANES, _LANES), tile_rows
    ).reshape(-1)
    out_tail = jnp.maximum(x_flat[n_main:], zero)
    return jnp.concatenate([out_main, out_tail]).reshape(x.shape)


if __name__ == "__main__":
    key = jax.random.PRNGKey(0)
    k1, k2, k3 = jax.random.split(key, 3)

    # NCHW, small shapes: batch=2, channels=4, spatial=16x16 (single block).
    x1 = jax.random.normal(k1, (2, 4, 16, 16), dtype=jnp.float32)
    y1 = jax.block_until_ready(non_inplace_relu(x1))
    assert y1.shape == x1.shape and y1.dtype == x1.dtype
    assert jnp.allclose(y1, jnp.maximum(x1, 0.0)), "mismatch vs reference ReLU"

    # Odd size (105 elems): exercises the no-pad tail path.
    x2 = jax.random.normal(k2, (3, 5, 7), dtype=jnp.float32)
    y2 = jax.block_until_ready(non_inplace_relu(x2))
    assert jnp.allclose(y2, jnp.maximum(x2, 0.0)), "mismatch vs reference ReLU"

    # bf16, 64 rows -> 2-block grid (dual-TC path on v7x; legal 32-row tiles).
    x3 = jax.random.normal(k3, (2, 4, 32, 32), dtype=jnp.bfloat16)
    y3 = jax.block_until_ready(non_inplace_relu(x3))
    assert y3.dtype == jnp.bfloat16
    assert jnp.array_equal(y3, jnp.maximum(x3, jnp.zeros((), jnp.bfloat16)))

    print("KERNEL_OK")
</pallas_src>

<mosaic_0001>
module attributes {stable_mosaic.version = 11 : i64} {
  func.func @_relu_kernel(%arg0: i32, %arg1: memref<16x128xf32, #tpu.memory_space<vmem>>, %arg2: memref<16x128xf32, #tpu.memory_space<vmem>>) attributes {dimension_semantics = [#tpu.dimension_semantics<parallel>], iteration_bounds = array<i64: 1>, scalar_prefetch = 0 : i64, scratch_operands = 0 : i64, tpu.core_type = #tpu.core_type<tc>, window_params = [{transform_indices = @transform_0, window_bounds = array<i64: 16, 128>}, {transform_indices = @transform_1, window_bounds = array<i64: 16, 128>}]} {
    %c0 = arith.constant 0 : index
    %c0_0 = arith.constant 0 : index
    %0 = vector.load %arg1[%c0, %c0_0] : memref<16x128xf32, #tpu.memory_space<vmem>>, vector<16x128xf32>
    %cst = arith.constant 0.000000e+00 : f32
    %1 = vector.broadcast %cst : f32 to vector<16x128xf32>
    %2 = arith.maximumf %0, %1 : vector<16x128xf32>
    %c0_1 = arith.constant 0 : index
    %c0_2 = arith.constant 0 : index
    %3 = vector.load %arg2[%c0_1, %c0_2] : memref<16x128xf32, #tpu.memory_space<vmem>>, vector<16x128xf32>
    tpu.vector_store %arg2[%c0_1, %c0_2], %2 {strides = array<i32>} : memref<16x128xf32, #tpu.memory_space<vmem>>, vector<16x128xf32>,
    return
  }
  func.func @transform_0(%arg0: i32) -> (i32, i32) {
    %c0_i32 = arith.constant 0 : i32
    %c0_i32_0 = arith.constant 0 : i32
    return %arg0, %c0_i32 : i32, i32
  }
  func.func @transform_1(%arg0: i32) -> (i32, i32) {
    %c0_i32 = arith.constant 0 : i32
    %c0_i32_0 = arith.constant 0 : i32
    return %arg0, %c0_i32 : i32, i32
  }
}

</mosaic_0001>

<llo_original>
// kernel: tpu_custom_call.1
$region0: #{tpu_custom_call.1}
  #allocation0 [shape = 'u32[]', space=smem, size = 0x4, offset = 0x4, fixed_abs, tag = 'smem constant byte address 0x4 - core index']
  #allocation1 [shape = 'u32[144,128]{1,0:T(1,128)}', space=vmem, size = 0x12000, scoped, tag = 'internal scratch']
  %s0 = inlined_call_operand.hbm [shape: f32[16,128], index: 0, kind: input, shape index: {}]
  %s1 = inlined_call_operand.hbm [shape: f32[16,128], index: 1, kind: output, shape index: {}]
  %s2 = sld [smem:[#allocation0]]
  $region18: #{tpu_custom_call.1} parent=0
    _
  %s4 = ssub.s32 1, %s2
  %s5 = scalar_select 0, %s4, %s2
  $region1: #{tpu_custom_call.1} parent=0
    #allocation2 [shape = 'u8[8192]{0}', space=vmem, size = 0x2000, scoped, tag = 'input window, operand 0, single buffered']
    #allocation3 [shape = 's32[1]{0}', space=sflag, size = 0x4, scoped, tag = 'scoped memory for tpu_custom_call.1']
    #allocation4 [shape = 's32[1]{0}', space=sflag, size = 0x4, scoped, tag = 'scoped memory for tpu_custom_call.1']
    #allocation5 [shape = 'u8[8192]{0}', space=vmem, size = 0x2000, scoped, tag = 'output window, operand 0, single buffered']
    %6 = vsyncpa [#allocation3], 0
    %7 = vsyncpa [#allocation4], 0
    // Predicated region
    $region2: #{tpu_custom_call.1} parent=1 // pred_check
      _
    $region3: #{tpu_custom_call.1} parent=1 // pred_check_branch
      %9 = sbr.rel (0) target = $region5
    $region4: #{tpu_custom_call.1} parent=1 // pred_region
      %s11 = ssub.s32 256, 256
      %12 = vsyncadd [#allocation3], %s11
      %s13 = sshll.u32 [#allocation2], 4
      %s14 = int_to_ptr.vmem [resolvable:$true] %s13
      %19 = dma.hbm_to_vmem [thread:$0]  %s0, 256, %s14, [#allocation3], 128, 128, 8
    $region5: #{tpu_custom_call.1} parent=1 // pred_fallthru
      _
    // Predicated region
    $region6: #{tpu_custom_call.1} parent=1 // pred_check
      _
    $region7: #{tpu_custom_call.1} parent=1 // pred_check_branch
      %21 = sbr.rel (0) target = $region9
    $region8: #{tpu_custom_call.1} parent=1 // pred_region
      %22 = dma.done [#allocation3], 256
    $region9: #{tpu_custom_call.1} parent=1 // pred_fallthru
      _
    %v23 = vld [vmem:[#allocation2] sm:$0xff]
    %v24 = vld [vmem:[#allocation2 + $0x8] sm:$0xff]
    %v25 = vmax.f32 %v23, 0.0
    %v26 = vmax.f32 %v24, 0.0
    %27 = vst [vmem:[#allocation5] sm:$0xff] %v25
    %28 = vst [vmem:[#allocation5 + $0x8] sm:$0xff] %v26
    // Predicated region
    $region10: #{tpu_custom_call.1} parent=1 // pred_check
      _
    $region11: #{tpu_custom_call.1} parent=1 // pred_check_branch
      %30 = sbr.rel (0) target = $region13
    $region12: #{tpu_custom_call.1} parent=1 // pred_region
      %s32 = ssub.s32 256, 256
      %33 = vsyncadd [#allocation4], %s32
      %s34 = sshll.u32 [#allocation5], 4
      %s35 = int_to_ptr.vmem [resolvable:$true] %s34
      %40 = dma.vmem_to_hbm [thread:$0]  %s35, 256, %s1, [#allocation4], 128, 128, 8
    $region13: #{tpu_custom_call.1} parent=1 // pred_fallthru
      _
    // Predicated region
    $region14: #{tpu_custom_call.1} parent=1 // pred_check
      _
    $region15: #{tpu_custom_call.1} parent=1 // pred_check_branch
      %42 = sbr.rel (0) target = $region17
    $region16: #{tpu_custom_call.1} parent=1 // pred_region
      %43 = dma.done [#allocation4], 256
    $region17: #{tpu_custom_call.1} parent=1 // pred_fallthru
      _
    %44 = vsyncpa [#allocation3], 1
    %45 = vsyncpa [#allocation4], 1

</llo_original>
